<compile_context>
chip_gen: v5e
topology: v5e:2x2
jax: 0.10.0
libtpu: 0.0.40
codegen_flags: <defaults>
</compile_context>

<pallas_src>
import functools

import jax
import jax.numpy as jnp
from jax.experimental import pallas as pl
from jax.experimental.pallas import tpu as pltpu


def _mha_kernel(xq_ref, xk_ref, xv_ref,
                wq_ref, bq_ref, wk_ref, bk_ref, wv_ref, bv_ref,
                woh_ref, bo_ref,
                out_ref, attn_ref,
                *, batch, seq, n_heads, head_dim, mxu_dtype):
    """Single-invocation MHA: fused projections + head-batched attention."""
    inv_scale = 1.0 / (head_dim ** 0.5)

    # Cast MXU operands once (bf16 feed on v6e/v7x; f32 accumulation below).
    xq = xq_ref[...].astype(mxu_dtype)
    xk = xk_ref[...].astype(mxu_dtype)
    xv = xv_ref[...].astype(mxu_dtype)
    wq = wq_ref[...].astype(mxu_dtype)
    wk = wk_ref[...].astype(mxu_dtype)
    wv = wv_ref[...].astype(mxu_dtype)
    woh = woh_ref[...].astype(mxu_dtype)          # (NH, HD, H), pre-split on host

    # Fused-batch projections: one (B*S, H) @ (H, H) matmul each.
    Q = jnp.dot(xq, wq, preferred_element_type=jnp.float32) + bq_ref[...]
    K = jnp.dot(xk, wk, preferred_element_type=jnp.float32) + bk_ref[...]
    V = jnp.dot(xv, wv, preferred_element_type=jnp.float32) + bv_ref[...]

    # Split heads once per tensor: (NH, B*S, HD).  Static lane slices + one
    # stack; no per-head matmuls / transposes / concatenates downstream.
    def split_heads(x):
        return jnp.stack(
            [x[:, h * head_dim:(h + 1) * head_dim] for h in range(n_heads)],
            axis=0)

    Qh, Kh, Vh = split_heads(Q), split_heads(K), split_heads(V)

    attn_parts = []
    out_parts = []
    # Tiny static batch loop; every iteration is fully head-batched.  (At real
    # sizes this would become a "parallel" grid axis over batch / query blocks
    # — e.g. to use both TensorCores on v7x and bound the S^2 VMEM tile.)
    for b in range(batch):
        rows = slice(b * seq, (b + 1) * seq)       # sublane-aligned (seq % 8 == 0)
        Qb = Qh[:, rows, :].astype(mxu_dtype)      # (NH, S, HD)
        Kb = Kh[:, rows, :].astype(mxu_dtype)
        Vb = Vh[:, rows, :].astype(mxu_dtype)

        # Scores: K "transpose" absorbed into the contraction (no explicit .T).
        e = jnp.einsum('hqd,hkd->hqk', Qb, Kb,
                       preferred_element_type=jnp.float32) * inv_scale  # (NH,S,S)
        # TODO(synk): mask / masked_fill branch not implemented (module default
        # mask=None); dropout on `a` is eval-mode identity.
        m = jnp.max(e, axis=-1, keepdims=True)
        p = jnp.exp(e - m)                          # f32 softmax math (v5e-safe)
        a = p * pl.reciprocal(jnp.sum(p, axis=-1, keepdims=True), approx=True)
        attn_parts.append(a)

        ctx = jnp.einsum('hqk,hkd->hqd', a.astype(mxu_dtype), Vb,
                         preferred_element_type=jnp.float32)            # (NH,S,HD)
        # Output projection folded per head and reduced over heads
        # (replaces the lane concatenate of the head contexts).
        y = jnp.einsum('hqd,hdo->hqo', ctx.astype(mxu_dtype), woh,
                       preferred_element_type=jnp.float32)              # (NH,S,H)
        out_parts.append(jnp.sum(y, axis=0) + bo_ref[...])              # (S,H)

    # One dense store per output.
    out_ref[...] = jnp.concatenate(out_parts, axis=0)    # (B*S, H), lane dim = H
    attn_ref[...] = jnp.stack(attn_parts, axis=0)        # (B, NH, S, S)


def mha_pallas(q, k, v, params, n_heads, mxu_dtype=jnp.bfloat16):
    """q, k, v: (B, S, H) f32.  Returns (x (B,S,H), attn (B, n_heads, S, S))."""
    wq, bq, wk, bk, wv, bv, wo, bo = params
    Bd, Sd, Hd = q.shape
    assert Hd % n_heads == 0, "hid_dim must be divisible by n_heads"
    hd = Hd // n_heads

    # Layout plumbing on the host/XLA side (free): flatten (B, S) for the fused
    # projections and pre-split the output-projection weight per head.
    q2 = q.reshape(Bd * Sd, Hd)
    k2 = k.reshape(Bd * Sd, Hd)
    v2 = v.reshape(Bd * Sd, Hd)
    wo_h = wo.reshape(n_heads, hd, Hd)             # rows ordered [head, head_dim]

    kernel = functools.partial(_mha_kernel, batch=Bd, seq=Sd,
                               n_heads=n_heads, head_dim=hd, mxu_dtype=mxu_dtype)

    def vmem():
        return pl.BlockSpec(memory_space=pltpu.MemorySpace.VMEM)

    x2, attn = pl.pallas_call(
        kernel,
        out_shape=(
            jax.ShapeDtypeStruct((Bd * Sd, Hd), jnp.float32),
            jax.ShapeDtypeStruct((Bd, n_heads, Sd, Sd), jnp.float32),
        ),
        in_specs=[vmem() for _ in range(11)],
        out_specs=(vmem(), vmem()),
        compiler_params=pltpu.CompilerParams(vmem_limit_bytes=32 * 1024 * 1024),
    )(q2, k2, v2, wq, bq, wk, bk, wv, bv, wo_h, bo)

    return x2.reshape(Bd, Sd, Hd), attn


def mha_reference(q, k, v, params, n_heads):
    """Pure-JAX f32 reference mirroring the PyTorch forward (mask=None, eval)."""
    wq, bq, wk, bk, wv, bv, wo, bo = params
    Bd, Sd, Hd = q.shape
    hd = Hd // n_heads
    Q = (q @ wq + bq).reshape(Bd, Sd, n_heads, hd).transpose(0, 2, 1, 3)
    K = (k @ wk + bk).reshape(Bd, Sd, n_heads, hd).transpose(0, 2, 1, 3)
    V = (v @ wv + bv).reshape(Bd, Sd, n_heads, hd).transpose(0, 2, 1, 3)
    e = jnp.einsum("bhqd,bhkd->bhqk", Q, K) / jnp.sqrt(jnp.float32(hd))
    a = jax.nn.softmax(e, axis=-1)
    x = jnp.einsum("bhqk,bhkd->bhqd", a, V)
    x = x.transpose(0, 2, 1, 3).reshape(Bd, Sd, Hd)
    return x @ wo + bo, a


def init_params(key, hid_dim):
    """Deterministic synthetic params (shapes match nn.Linear(hid, hid) x4)."""
    keys = jax.random.split(key, 8)
    scale = 1.0 / (hid_dim ** 0.5)

    def lin(kw, kb):
        w = jax.random.uniform(kw, (hid_dim, hid_dim), jnp.float32, -scale, scale)
        b = jax.random.uniform(kb, (1, hid_dim), jnp.float32, -scale, scale)
        return w, b

    wq, bq = lin(keys[0], keys[1])
    wk, bk = lin(keys[2], keys[3])
    wv, bv = lin(keys[4], keys[5])
    wo, bo = lin(keys[6], keys[7])
    return (wq, bq, wk, bk, wv, bv, wo, bo)


if __name__ == "__main__":
    B, S, HID, NH = 2, 8, 32, 4

    root = jax.random.PRNGKey(0)
    k_q, k_k, k_v, k_p = jax.random.split(root, 4)
    q = jax.random.normal(k_q, (B, S, HID), jnp.float32)
    k = jax.random.normal(k_k, (B, S, HID), jnp.float32)
    v = jax.random.normal(k_v, (B, S, HID), jnp.float32)
    params = init_params(k_p, HID)

    x_out, attn = mha_pallas(q, k, v, params, n_heads=NH)
    jax.block_until_ready((x_out, attn))

    x_ref, a_ref = mha_reference(q, k, v, params, NH)
    assert x_out.shape == (B, S, HID) and attn.shape == (B, NH, S, S)
    # bf16 MXU operands + approx reciprocal -> modest tolerances vs f32 reference.
    assert jnp.allclose(x_out, x_ref, atol=5e-2, rtol=5e-2), \
        float(jnp.max(jnp.abs(x_out - x_ref)))
    assert jnp.allclose(attn, a_ref, atol=2e-2, rtol=2e-2), \
        float(jnp.max(jnp.abs(attn - a_ref)))

    print("KERNEL_OK")
</pallas_src>

<mosaic_0001>
module attributes {stable_mosaic.version = 11 : i64} {
  func.func @_mha_kernel(%arg0: memref<16x32xf32, #tpu.memory_space<vmem>>, %arg1: memref<16x32xf32, #tpu.memory_space<vmem>>, %arg2: memref<16x32xf32, #tpu.memory_space<vmem>>, %arg3: memref<32x32xf32, #tpu.memory_space<vmem>>, %arg4: memref<1x32xf32, #tpu.memory_space<vmem>>, %arg5: memref<32x32xf32, #tpu.memory_space<vmem>>, %arg6: memref<1x32xf32, #tpu.memory_space<vmem>>, %arg7: memref<32x32xf32, #tpu.memory_space<vmem>>, %arg8: memref<1x32xf32, #tpu.memory_space<vmem>>, %arg9: memref<4x8x32xf32, #tpu.memory_space<vmem>>, %arg10: memref<1x32xf32, #tpu.memory_space<vmem>>, %arg11: memref<16x32xf32, #tpu.memory_space<vmem>>, %arg12: memref<2x4x8x8xf32, #tpu.memory_space<vmem>>) attributes {dimension_semantics = [], scalar_prefetch = 0 : i64, scratch_operands = 0 : i64, tpu.core_type = #tpu.core_type<tc>} {
    %c0 = arith.constant 0 : index
    %c0_0 = arith.constant 0 : index
    %0 = vector.load %arg0[%c0, %c0_0] : memref<16x32xf32, #tpu.memory_space<vmem>>, vector<16x32xf32>
    %1 = arith.truncf %0 : vector<16x32xf32> to vector<16x32xbf16>
    %c0_1 = arith.constant 0 : index
    %c0_2 = arith.constant 0 : index
    %2 = vector.load %arg1[%c0_1, %c0_2] : memref<16x32xf32, #tpu.memory_space<vmem>>, vector<16x32xf32>
    %3 = arith.truncf %2 : vector<16x32xf32> to vector<16x32xbf16>
    %c0_3 = arith.constant 0 : index
    %c0_4 = arith.constant 0 : index
    %4 = vector.load %arg2[%c0_3, %c0_4] : memref<16x32xf32, #tpu.memory_space<vmem>>, vector<16x32xf32>
    %5 = arith.truncf %4 : vector<16x32xf32> to vector<16x32xbf16>
    %c0_5 = arith.constant 0 : index
    %c0_6 = arith.constant 0 : index
    %6 = vector.load %arg3[%c0_5, %c0_6] : memref<32x32xf32, #tpu.memory_space<vmem>>, vector<32x32xf32>
    %7 = arith.truncf %6 : vector<32x32xf32> to vector<32x32xbf16>
    %c0_7 = arith.constant 0 : index
    %c0_8 = arith.constant 0 : index
    %8 = vector.load %arg5[%c0_7, %c0_8] : memref<32x32xf32, #tpu.memory_space<vmem>>, vector<32x32xf32>
    %9 = arith.truncf %8 : vector<32x32xf32> to vector<32x32xbf16>
    %c0_9 = arith.constant 0 : index
    %c0_10 = arith.constant 0 : index
    %10 = vector.load %arg7[%c0_9, %c0_10] : memref<32x32xf32, #tpu.memory_space<vmem>>, vector<32x32xf32>
    %11 = arith.truncf %10 : vector<32x32xf32> to vector<32x32xbf16>
    %c0_11 = arith.constant 0 : index
    %c0_12 = arith.constant 0 : index
    %c0_13 = arith.constant 0 : index
    %12 = vector.load %arg9[%c0_11, %c0_12, %c0_13] : memref<4x8x32xf32, #tpu.memory_space<vmem>>, vector<4x8x32xf32>
    %13 = arith.truncf %12 : vector<4x8x32xf32> to vector<4x8x32xbf16>
    %cst = arith.constant dense<0.000000e+00> : vector<16x32xf32>
    %14 = tpu.matmul %1, %7, %cst {dimension_numbers = #tpu.dot_dimension_numbers<[1], [0], [0], [1], [0, 0, 1, 1], [], []>} : vector<16x32xbf16>, vector<32x32xbf16>, vector<16x32xf32> -> vector<16x32xf32>
    %c0_14 = arith.constant 0 : index
    %c0_15 = arith.constant 0 : index
    %15 = vector.load %arg4[%c0_14, %c0_15] : memref<1x32xf32, #tpu.memory_space<vmem>>, vector<1x32xf32>
    %16 = vector.broadcast %15 : vector<1x32xf32> to vector<16x32xf32>
    %17 = arith.addf %14, %16 : vector<16x32xf32>
    %cst_16 = arith.constant dense<0.000000e+00> : vector<16x32xf32>
    %18 = tpu.matmul %3, %9, %cst_16 {dimension_numbers = #tpu.dot_dimension_numbers<[1], [0], [0], [1], [0, 0, 1, 1], [], []>} : vector<16x32xbf16>, vector<32x32xbf16>, vector<16x32xf32> -> vector<16x32xf32>
    %c0_17 = arith.constant 0 : index
    %c0_18 = arith.constant 0 : index
    %19 = vector.load %arg6[%c0_17, %c0_18] : memref<1x32xf32, #tpu.memory_space<vmem>>, vector<1x32xf32>
    %20 = vector.broadcast %19 : vector<1x32xf32> to vector<16x32xf32>
    %21 = arith.addf %18, %20 : vector<16x32xf32>
    %cst_19 = arith.constant dense<0.000000e+00> : vector<16x32xf32>
    %22 = tpu.matmul %5, %11, %cst_19 {dimension_numbers = #tpu.dot_dimension_numbers<[1], [0], [0], [1], [0, 0, 1, 1], [], []>} : vector<16x32xbf16>, vector<32x32xbf16>, vector<16x32xf32> -> vector<16x32xf32>
    %c0_20 = arith.constant 0 : index
    %c0_21 = arith.constant 0 : index
    %23 = vector.load %arg8[%c0_20, %c0_21] : memref<1x32xf32, #tpu.memory_space<vmem>>, vector<1x32xf32>
    %24 = vector.broadcast %23 : vector<1x32xf32> to vector<16x32xf32>
    %25 = arith.addf %22, %24 : vector<16x32xf32>
    %26 = vector.extract_strided_slice %17 {offsets = [0, 0], sizes = [16, 8], strides = [1, 1]} : vector<16x32xf32> to vector<16x8xf32>
    %27 = vector.extract_strided_slice %17 {offsets = [0, 8], sizes = [16, 8], strides = [1, 1]} : vector<16x32xf32> to vector<16x8xf32>
    %28 = vector.extract_strided_slice %17 {offsets = [0, 16], sizes = [16, 8], strides = [1, 1]} : vector<16x32xf32> to vector<16x8xf32>
    %29 = vector.extract_strided_slice %17 {offsets = [0, 24], sizes = [16, 8], strides = [1, 1]} : vector<16x32xf32> to vector<16x8xf32>
    %30 = vector.shape_cast %26 : vector<16x8xf32> to vector<1x16x8xf32>
    %31 = vector.shape_cast %27 : vector<16x8xf32> to vector<1x16x8xf32>
    %32 = vector.shape_cast %28 : vector<16x8xf32> to vector<1x16x8xf32>
    %33 = vector.shape_cast %29 : vector<16x8xf32> to vector<1x16x8xf32>
    %34 = tpu.concatenate %30, %31, %32, %33 in 0 : vector<1x16x8xf32>, vector<1x16x8xf32>, vector<1x16x8xf32>, vector<1x16x8xf32> -> vector<4x16x8xf32>
    %35 = vector.extract_strided_slice %21 {offsets = [0, 0], sizes = [16, 8], strides = [1, 1]} : vector<16x32xf32> to vector<16x8xf32>
    %36 = vector.extract_strided_slice %21 {offsets = [0, 8], sizes = [16, 8], strides = [1, 1]} : vector<16x32xf32> to vector<16x8xf32>
    %37 = vector.extract_strided_slice %21 {offsets = [0, 16], sizes = [16, 8], strides = [1, 1]} : vector<16x32xf32> to vector<16x8xf32>
    %38 = vector.extract_strided_slice %21 {offsets = [0, 24], sizes = [16, 8], strides = [1, 1]} : vector<16x32xf32> to vector<16x8xf32>
    %39 = vector.shape_cast %35 : vector<16x8xf32> to vector<1x16x8xf32>
    %40 = vector.shape_cast %36 : vector<16x8xf32> to vector<1x16x8xf32>
    %41 = vector.shape_cast %37 : vector<16x8xf32> to vector<1x16x8xf32>
    %42 = vector.shape_cast %38 : vector<16x8xf32> to vector<1x16x8xf32>
    %43 = tpu.concatenate %39, %40, %41, %42 in 0 : vector<1x16x8xf32>, vector<1x16x8xf32>, vector<1x16x8xf32>, vector<1x16x8xf32> -> vector<4x16x8xf32>
    %44 = vector.extract_strided_slice %25 {offsets = [0, 0], sizes = [16, 8], strides = [1, 1]} : vector<16x32xf32> to vector<16x8xf32>
    %45 = vector.extract_strided_slice %25 {offsets = [0, 8], sizes = [16, 8], strides = [1, 1]} : vector<16x32xf32> to vector<16x8xf32>
    %46 = vector.extract_strided_slice %25 {offsets = [0, 16], sizes = [16, 8], strides = [1, 1]} : vector<16x32xf32> to vector<16x8xf32>
    %47 = vector.extract_strided_slice %25 {offsets = [0, 24], sizes = [16, 8], strides = [1, 1]} : vector<16x32xf32> to vector<16x8xf32>
    %48 = vector.shape_cast %44 : vector<16x8xf32> to vector<1x16x8xf32>
    %49 = vector.shape_cast %45 : vector<16x8xf32> to vector<1x16x8xf32>
    %50 = vector.shape_cast %46 : vector<16x8xf32> to vector<1x16x8xf32>
    %51 = vector.shape_cast %47 : vector<16x8xf32> to vector<1x16x8xf32>
    %52 = tpu.concatenate %48, %49, %50, %51 in 0 : vector<1x16x8xf32>, vector<1x16x8xf32>, vector<1x16x8xf32>, vector<1x16x8xf32> -> vector<4x16x8xf32>
    %53 = vector.extract_strided_slice %34 {offsets = [0, 0, 0], sizes = [4, 8, 8], strides = [1, 1, 1]} : vector<4x16x8xf32> to vector<4x8x8xf32>
    %54 = arith.truncf %53 : vector<4x8x8xf32> to vector<4x8x8xbf16>
    %55 = vector.extract_strided_slice %43 {offsets = [0, 0, 0], sizes = [4, 8, 8], strides = [1, 1, 1]} : vector<4x16x8xf32> to vector<4x8x8xf32>
    %56 = arith.truncf %55 : vector<4x8x8xf32> to vector<4x8x8xbf16>
    %57 = vector.extract_strided_slice %52 {offsets = [0, 0, 0], sizes = [4, 8, 8], strides = [1, 1, 1]} : vector<4x16x8xf32> to vector<4x8x8xf32>
    %58 = arith.truncf %57 : vector<4x8x8xf32> to vector<4x8x8xbf16>
    "tpu.trace_start"() <{level = 10 : i32, message = "hqd,hkd->hqk"}> : () -> ()
    %cst_22 = arith.constant dense<0.000000e+00> : vector<4x8x8xf32>
    %59 = tpu.matmul %54, %56, %cst_22 {dimension_numbers = #tpu.dot_dimension_numbers<[2], [2], [1], [1], [0, 0, 0, 1, 1, 1], [0], [0]>} : vector<4x8x8xbf16>, vector<4x8x8xbf16>, vector<4x8x8xf32> -> vector<4x8x8xf32>
    "tpu.trace_stop"() : () -> ()
    %cst_23 = arith.constant 0.353553385 : f32
    %60 = vector.broadcast %cst_23 : f32 to vector<4x8x8xf32>
    %61 = arith.mulf %59, %60 : vector<4x8x8xf32>
    %cst_24 = arith.constant dense<0xFF800000> : vector<4x8xf32>
    %62 = vector.multi_reduction <maximumf>, %61, %cst_24 [2] : vector<4x8x8xf32> to vector<4x8xf32>
    %63 = vector.shape_cast %62 : vector<4x8xf32> to vector<4x8x1xf32>
    %64 = vector.broadcast %63 : vector<4x8x1xf32> to vector<4x8x8xf32>
    %65 = arith.subf %61, %64 : vector<4x8x8xf32>
    %66 = math.exp %65 : vector<4x8x8xf32>
    %cst_25 = arith.constant dense<0.000000e+00> : vector<4x8xf32>
    %67 = vector.multi_reduction <add>, %66, %cst_25 [2] : vector<4x8x8xf32> to vector<4x8xf32>
    %68 = vector.shape_cast %67 : vector<4x8xf32> to vector<4x8x1xf32>
    %69 = tpu.reciprocal %68 {approx = true} : vector<4x8x1xf32> -> vector<4x8x1xf32>
    %70 = vector.broadcast %69 : vector<4x8x1xf32> to vector<4x8x8xf32>
    %71 = arith.mulf %66, %70 : vector<4x8x8xf32>
    %72 = arith.truncf %71 : vector<4x8x8xf32> to vector<4x8x8xbf16>
    "tpu.trace_start"() <{level = 10 : i32, message = "hqk,hkd->hqd"}> : () -> ()
    %cst_26 = arith.constant dense<0.000000e+00> : vector<4x8x8xf32>
    %73 = tpu.matmul %72, %58, %cst_26 {dimension_numbers = #tpu.dot_dimension_numbers<[2], [1], [1], [2], [0, 0, 0, 1, 1, 2], [0], [0]>} : vector<4x8x8xbf16>, vector<4x8x8xbf16>, vector<4x8x8xf32> -> vector<4x8x8xf32>
    "tpu.trace_stop"() : () -> ()
    %74 = arith.truncf %73 : vector<4x8x8xf32> to vector<4x8x8xbf16>
    "tpu.trace_start"() <{level = 10 : i32, message = "hqd,hdo->hqo"}> : () -> ()
    %cst_27 = arith.constant dense<0.000000e+00> : vector<4x8x32xf32>
    %75 = tpu.matmul %74, %13, %cst_27 {dimension_numbers = #tpu.dot_dimension_numbers<[2], [1], [1], [2], [0, 0, 0, 1, 1, 2], [0], [0]>} : vector<4x8x8xbf16>, vector<4x8x32xbf16>, vector<4x8x32xf32> -> vector<4x8x32xf32>
    "tpu.trace_stop"() : () -> ()
    %cst_28 = arith.constant dense<0.000000e+00> : vector<8x32xf32>
    %76 = vector.multi_reduction <add>, %75, %cst_28 [0] : vector<4x8x32xf32> to vector<8x32xf32>
    %c0_29 = arith.constant 0 : index
    %c0_30 = arith.constant 0 : index
    %77 = vector.load %arg10[%c0_29, %c0_30] : memref<1x32xf32, #tpu.memory_space<vmem>>, vector<1x32xf32>
    %78 = vector.broadcast %77 : vector<1x32xf32> to vector<8x32xf32>
    %79 = arith.addf %76, %78 : vector<8x32xf32>
    %80 = vector.extract_strided_slice %34 {offsets = [0, 8, 0], sizes = [4, 8, 8], strides = [1, 1, 1]} : vector<4x16x8xf32> to vector<4x8x8xf32>
    %81 = arith.truncf %80 : vector<4x8x8xf32> to vector<4x8x8xbf16>
    %82 = vector.extract_strided_slice %43 {offsets = [0, 8, 0], sizes = [4, 8, 8], strides = [1, 1, 1]} : vector<4x16x8xf32> to vector<4x8x8xf32>
    %83 = arith.truncf %82 : vector<4x8x8xf32> to vector<4x8x8xbf16>
    %84 = vector.extract_strided_slice %52 {offsets = [0, 8, 0], sizes = [4, 8, 8], strides = [1, 1, 1]} : vector<4x16x8xf32> to vector<4x8x8xf32>
    %85 = arith.truncf %84 : vector<4x8x8xf32> to vector<4x8x8xbf16>
    "tpu.trace_start"() <{level = 10 : i32, message = "hqd,hkd->hqk"}> : () -> ()
    %cst_31 = arith.constant dense<0.000000e+00> : vector<4x8x8xf32>
    %86 = tpu.matmul %81, %83, %cst_31 {dimension_numbers = #tpu.dot_dimension_numbers<[2], [2], [1], [1], [0, 0, 0, 1, 1, 1], [0], [0]>} : vector<4x8x8xbf16>, vector<4x8x8xbf16>, vector<4x8x8xf32> -> vector<4x8x8xf32>
    "tpu.trace_stop"() : () -> ()
    %cst_32 = arith.constant 0.353553385 : f32
    %87 = vector.broadcast %cst_32 : f32 to vector<4x8x8xf32>
    %88 = arith.mulf %86, %87 : vector<4x8x8xf32>
    %cst_33 = arith.constant dense<0xFF800000> : vector<4x8xf32>
    %89 = vector.multi_reduction <maximumf>, %88, %cst_33 [2] : vector<4x8x8xf32> to vector<4x8xf32>
    %90 = vector.shape_cast %89 : vector<4x8xf32> to vector<4x8x1xf32>
    %91 = vector.broadcast %90 : vector<4x8x1xf32> to vector<4x8x8xf32>
    %92 = arith.subf %88, %91 : vector<4x8x8xf32>
    %93 = math.exp %92 : vector<4x8x8xf32>
    %cst_34 = arith.constant dense<0.000000e+00> : vector<4x8xf32>
    %94 = vector.multi_reduction <add>, %93, %cst_34 [2] : vector<4x8x8xf32> to vector<4x8xf32>
    %95 = vector.shape_cast %94 : vector<4x8xf32> to vector<4x8x1xf32>
    %96 = tpu.reciprocal %95 {approx = true} : vector<4x8x1xf32> -> vector<4x8x1xf32>
    %97 = vector.broadcast %96 : vector<4x8x1xf32> to vector<4x8x8xf32>
    %98 = arith.mulf %93, %97 : vector<4x8x8xf32>
    %99 = arith.truncf %98 : vector<4x8x8xf32> to vector<4x8x8xbf16>
    "tpu.trace_start"() <{level = 10 : i32, message = "hqk,hkd->hqd"}> : () -> ()
    %cst_35 = arith.constant dense<0.000000e+00> : vector<4x8x8xf32>
    %100 = tpu.matmul %99, %85, %cst_35 {dimension_numbers = #tpu.dot_dimension_numbers<[2], [1], [1], [2], [0, 0, 0, 1, 1, 2], [0], [0]>} : vector<4x8x8xbf16>, vector<4x8x8xbf16>, vector<4x8x8xf32> -> vector<4x8x8xf32>
    "tpu.trace_stop"() : () -> ()
    %101 = arith.truncf %100 : vector<4x8x8xf32> to vector<4x8x8xbf16>
    "tpu.trace_start"() <{level = 10 : i32, message = "hqd,hdo->hqo"}> : () -> ()
    %cst_36 = arith.constant dense<0.000000e+00> : vector<4x8x32xf32>
    %102 = tpu.matmul %101, %13, %cst_36 {dimension_numbers = #tpu.dot_dimension_numbers<[2], [1], [1], [2], [0, 0, 0, 1, 1, 2], [0], [0]>} : vector<4x8x8xbf16>, vector<4x8x32xbf16>, vector<4x8x32xf32> -> vector<4x8x32xf32>
    "tpu.trace_stop"() : () -> ()
    %cst_37 = arith.constant dense<0.000000e+00> : vector<8x32xf32>
    %103 = vector.multi_reduction <add>, %102, %cst_37 [0] : vector<4x8x32xf32> to vector<8x32xf32>
    %c0_38 = arith.constant 0 : index
    %c0_39 = arith.constant 0 : index
    %104 = vector.load %arg10[%c0_38, %c0_39] : memref<1x32xf32, #tpu.memory_space<vmem>>, vector<1x32xf32>
    %105 = vector.broadcast %104 : vector<1x32xf32> to vector<8x32xf32>
    %106 = arith.addf %103, %105 : vector<8x32xf32>
    %107 = tpu.concatenate %79, %106 in 0 : vector<8x32xf32>, vector<8x32xf32> -> vector<16x32xf32>
    %c0_40 = arith.constant 0 : index
    %c0_41 = arith.constant 0 : index
    %108 = vector.load %arg11[%c0_40, %c0_41] : memref<16x32xf32, #tpu.memory_space<vmem>>, vector<16x32xf32>
    tpu.vector_store %arg11[%c0_40, %c0_41], %107 {strides = array<i32>} : memref<16x32xf32, #tpu.memory_space<vmem>>, vector<16x32xf32>,
    %109 = vector.shape_cast %71 : vector<4x8x8xf32> to vector<1x4x8x8xf32>
    %110 = vector.shape_cast %98 : vector<4x8x8xf32> to vector<1x4x8x8xf32>
    %111 = tpu.concatenate %109, %110 in 0 : vector<1x4x8x8xf32>, vector<1x4x8x8xf32> -> vector<2x4x8x8xf32>
    %c0_42 = arith.constant 0 : index
    %c0_43 = arith.constant 0 : index
    %c0_44 = arith.constant 0 : index
    %c0_45 = arith.constant 0 : index
    %112 = vector.load %arg12[%c0_42, %c0_43, %c0_44, %c0_45] : memref<2x4x8x8xf32, #tpu.memory_space<vmem>>, vector<2x4x8x8xf32>
    tpu.vector_store %arg12[%c0_42, %c0_43, %c0_44, %c0_45], %111 {strides = array<i32>} : memref<2x4x8x8xf32, #tpu.memory_space<vmem>>, vector<2x4x8x8xf32>,
    return
  }
}

</mosaic_0001>

<llo_original>
// kernel: tpu_custom_call.1
$region0: #{tpu_custom_call.1}
  #allocation0 [shape = 'u32[]', space=smem, size = 0x4, offset = 0x4, fixed_abs, tag = 'smem constant byte address 0x4 - core index']
  #allocation1 [shape = 'u32[72,128]{1,0:T(1,128)}', space=vmem, size = 0x9000, scoped, tag = 'internal scratch']
  %s0 = inlined_call_operand.hbm [shape: f32[16,32], index: 0, kind: input, shape index: {}]
  %s1 = inlined_call_operand.hbm [shape: f32[16,32], index: 1, kind: input, shape index: {}]
  %s2 = inlined_call_operand.hbm [shape: f32[16,32], index: 2, kind: input, shape index: {}]
  %s3 = inlined_call_operand.hbm [shape: f32[32,32], index: 3, kind: input, shape index: {}]
  %s4 = inlined_call_operand.vmem [shape: f32[1,32], index: 4, kind: input, shape index: {}]
  %s5 = inlined_call_operand.hbm [shape: f32[32,32], index: 5, kind: input, shape index: {}]
  %s6 = inlined_call_operand.vmem [shape: f32[1,32], index: 6, kind: input, shape index: {}]
  %s7 = inlined_call_operand.hbm [shape: f32[32,32], index: 7, kind: input, shape index: {}]
  %s8 = inlined_call_operand.vmem [shape: f32[1,32], index: 8, kind: input, shape index: {}]
  %s9 = inlined_call_operand.hbm [shape: f32[4,8,32], index: 9, kind: input, shape index: {}]
  %s10 = inlined_call_operand.vmem [shape: f32[1,32], index: 10, kind: input, shape index: {}]
  %s11 = inlined_call_operand.hbm [shape: f32[16,32], index: 11, kind: output, shape index: {0}]
  %s12 = inlined_call_operand.hbm [shape: f32[2,4,8,8], index: 12, kind: output, shape index: {1}]
  %13 = xla_tuple %s11, %s12
  %s14 = sld [smem:[#allocation0]]
  $region90: #{tpu_custom_call.1} parent=0
    _
  %s16 = ssub.s32 1, %s14
  %s17 = scalar_select 0, %s16, %s14
  $region1: #{tpu_custom_call.1} parent=0
    #allocation2 [shape = 'u8[8192]{0}', space=vmem, size = 0x2000, scoped, tag = 'input window, operand 0, single buffered']
    #allocation3 [shape = 's32[1]{0}', space=sflag, size = 0x4, scoped, tag = 'scoped memory for tpu_custom_call.1']
    #allocation4 [shape = 's32[1]{0}', space=sflag, size = 0x4, scoped, tag = 'scoped memory for tpu_custom_call.1']
    #allocation5 [shape = 'u8[8192]{0}', space=vmem, size = 0x2000, scoped, tag = 'input window, operand 1, single buffered']
    #allocation6 [shape = 's32[1]{0}', space=sflag, size = 0x4, scoped, tag = 'scoped memory for tpu_custom_call.1']
    #allocation7 [shape = 'u8[8192]{0}', space=vmem, size = 0x2000, scoped, tag = 'input window, operand 2, single buffered']
    #allocation8 [shape = 'u8[16384]{0}', space=vmem, size = 0x4000, scoped, tag = 'input window, operand 3, single buffered']
    #allocation9 [shape = 's32[1]{0}', space=sflag, size = 0x4, scoped, tag = 'scoped memory for tpu_custom_call.1']
    #allocation10 [shape = 'u8[16384]{0}', space=vmem, size = 0x4000, scoped, tag = 'input window, operand 5, single buffered']
    #allocation11 [shape = 'u8[16384]{0}', space=vmem, size = 0x4000, scoped, tag = 'input window, operand 7, single buffered']
    #allocation12 [shape = 's32[1]{0}', space=sflag, size = 0x4, scoped, tag = 'scoped memory for tpu_custom_call.1']
    #allocation13 [shape = 'u8[16384]{0}', space=vmem, size = 0x4000, scoped, tag = 'input window, operand 9, single buffered']
    #allocation14 [shape = 'u8[8192]{0}', space=vmem, size = 0x2000, scoped, tag = 'output window, operand 0, single buffered']
    #allocation15 [shape = 'u8[32768]{0}', space=vmem, size = 0x8000, scoped, tag = 'output window, operand 1, single buffered']
    #allocation16 [shape = 's32[1]{0}', space=sflag, size = 0x4, scoped, tag = 'scoped memory for tpu_custom_call.1']
    %18 = vsyncpa [#allocation3], 0
    %19 = vsyncpa [#allocation6], 0
    %20 = vsyncpa [#allocation9], 0
    %21 = vsyncpa [#allocation12], 0
    %22 = vsyncpa [#allocation4], 0
    %23 = vsyncpa [#allocation16], 0
    // Predicated region
    $region2: #{tpu_custom_call.1} parent=1 // pred_check
      _
    $region3: #{tpu_custom_call.1} parent=1 // pred_check_branch
      %25 = sbr.rel (0) target = $region5
    $region4: #{tpu_custom_call.1} parent=1 // pred_region
      %27 = vsyncadd [#allocation3], 0
      %s28 = sshll.u32 %s0, 4
      %s29 = int_to_ptr.hbm [resolvable:$true] %s28
      %s30 = sshll.u32 [#allocation2], 4
      %s31 = int_to_ptr.vmem [resolvable:$true] %s30
      %36 = dma.hbm_to_vmem [thread:$0]  %s29, 256, %s31, [#allocation3], 128, 128, 8
    $region5: #{tpu_custom_call.1} parent=1 // pred_fallthru
      _
    // Predicated region
    $region6: #{tpu_custom_call.1} parent=1 // pred_check
      _
    $region7: #{tpu_custom_call.1} parent=1 // pred_check_branch
      %38 = sbr.rel (0) target = $region9
    $region8: #{tpu_custom_call.1} parent=1 // pred_region
      %40 = vsyncadd [#allocation6], 0
      %s41 = sshll.u32 %s1, 4
      %s42 = int_to_ptr.hbm [resolvable:$true] %s41
      %s43 = sshll.u32 [#allocation5], 4
      %s44 = int_to_ptr.vmem [resolvable:$true] %s43
      %49 = dma.hbm_to_vmem [thread:$0]  %s42, 256, %s44, [#allocation6], 128, 128, 8
    $region9: #{tpu_custom_call.1} parent=1 // pred_fallthru
      _
    // Predicated region
    $region10: #{tpu_custom_call.1} parent=1 // pred_check
      _
    $region11: #{tpu_custom_call.1} parent=1 // pred_check_branch
      %51 = sbr.rel (0) target = $region13
    $region12: #{tpu_custom_call.1} parent=1 // pred_region
      %53 = vsyncadd [#allocation6], 0
      %s54 = sshll.u32 %s2, 4
      %s55 = int_to_ptr.hbm [resolvable:$true] %s54
      %s56 = sshll.u32 [#allocation7], 4
      %s57 = int_to_ptr.vmem [resolvable:$true] %s56
      %62 = dma.hbm_to_vmem [thread:$0]  %s55, 256, %s57, [#allocation6], 128, 128, 8
    $region13: #{tpu_custom_call.1} parent=1 // pred_fallthru
      _
    // Predicated region
    $region14: #{tpu_custom_call.1} parent=1 // pred_check
      _
    $region15: #{tpu_custom_call.1} parent=1 // pred_check_branch
      %64 = sbr.rel (0) target = $region17
    $region16: #{tpu_custom_call.1} parent=1 // pred_region
      %66 = vsyncadd [#allocation9], 0
      %s67 = sshll.u32 %s3, 4
      %s68 = int_to_ptr.hbm [resolvable:$true] %s67
      %s69 = sshll.u32 [#allocation8], 4
      %s70 = int_to_ptr.vmem [resolvable:$true] %s69
      %75 = dma.hbm_to_vmem [thread:$0]  %s68, 512, %s70, [#allocation9], 128, 128, 8
    $region17: #{tpu_custom_call.1} parent=1 // pred_fallthru
      _
    // Predicated region
    $region18: #{tpu_custom_call.1} parent=1 // pred_check
      _
    $region19: #{tpu_custom_call.1} parent=1 // pred_check_branch
      %77 = sbr.rel (0) target = $region21
    $region20: #{tpu_custom_call.1} parent=1 // pred_region
      _
    $region21: #{tpu_custom_call.1} parent=1 // pred_fallthru
      _
    // Predicated region
    $region22: #{tpu_custom_call.1} parent=1 // pred_check
      _
    $region23: #{tpu_custom_call.1} parent=1 // pred_check_branch
      %79 = sbr.rel (0) target = $region25
    $region24: #{tpu_custom_call.1} parent=1 // pred_region
      %81 = vsyncadd [#allocation9], 0
      %s82 = sshll.u32 %s5, 4
      %s83 = int_to_ptr.hbm [resolvable:$true] %s82
      %s84 = sshll.u32 [#allocation10], 4
      %s85 = int_to_ptr.vmem [resolvable:$true] %s84
      %90 = dma.hbm_to_vmem [thread:$0]  %s83, 512, %s85, [#allocation9], 128, 128, 8
    $region25: #{tpu_custom_call.1} parent=1 // pred_fallthru
      _
    // Predicated region
    $region26: #{tpu_custom_call.1} parent=1 // pred_check
      _
    $region27: #{tpu_custom_call.1} parent=1 // pred_check_branch
      %92 = sbr.rel (0) target = $region29
    $region28: #{tpu_custom_call.1} parent=1 // pred_region
      _
    $region29: #{tpu_custom_call.1} parent=1 // pred_fallthru
      _
    // Predicated region
    $region30: #{tpu_custom_call.1} parent=1 // pred_check
      _
    $region31: #{tpu_custom_call.1} parent=1 // pred_check_branch
      %94 = sbr.rel (0) target = $region33
    $region32: #{tpu_custom_call.1} parent=1 // pred_region
      %96 = vsyncadd [#allocation12], 0
      %s97 = sshll.u32 %s7, 4
      %s98 = int_to_ptr.hbm [resolvable:$true] %s97
      %s99 = sshll.u32 [#allocation11], 4
      %s100 = int_to_ptr.vmem [resolvable:$true] %s99
      %105 = dma.hbm_to_vmem [thread:$0]  %s98, 512, %s100, [#allocation12], 128, 128, 8
    $region33: #{tpu_custom_call.1} parent=1 // pred_fallthru
      _
    // Predicated region
    $region34: #{tpu_custom_call.1} parent=1 // pred_check
      _
    $region35: #{tpu_custom_call.1} parent=1 // pred_check_branch
      %107 = sbr.rel (0) target = $region37
    $region36: #{tpu_custom_call.1} parent=1 // pred_region
      _
    $region37: #{tpu_custom_call.1} parent=1 // pred_fallthru
      _
    // Predicated region
    $region38: #{tpu_custom_call.1} parent=1 // pred_check
      _
    $region39: #{tpu_custom_call.1} parent=1 // pred_check_branch
      %109 = sbr.rel (0) target = $region41
    $region40: #{tpu_custom_call.1} parent=1 // pred_region
      %111 = vsyncadd [#allocation12], 0
      %s112 = sshll.u32 %s9, 4
      %s113 = int_to_ptr.hbm [resolvable:$true] %s112
      %s114 = sshll.u32 [#allocation13], 4
      %s115 = int_to_ptr.vmem [resolvable:$true] %s114
      %120 = dma.hbm_to_vmem [thread:$0]  %s113, 512, %s115, [#allocation12], 128, 128, 8
    $region41: #{tpu_custom_call.1} parent=1 // pred_fallthru
      _
    // Predicated region
    $region42: #{tpu_custom_call.1} parent=1 // pred_check
      _
    $region43: #{tpu_custom_call.1} parent=1 // pred_check_branch
      %122 = sbr.rel (0) target = $region45
    $region44: #{tpu_custom_call.1} parent=1 // pred_region
      _
    $region45: #{tpu_custom_call.1} parent=1 // pred_fallthru
      _
    // Predicated region
    $region46: #{tpu_custom_call.1} parent=1 // pred_check
      _
    $region47: #{tpu_custom_call.1} parent=1 // pred_check_branch
      %124 = sbr.rel (0) target = $region49
    $region48: #{tpu_custom_call.1} parent=1 // pred_region
      %126 = dma.done [#allocation3], 256
    $region49: #{tpu_custom_call.1} parent=1 // pred_fallthru
      _
    // Predicated region
    $region50: #{tpu_custom_call.1} parent=1 // pred_check
      _
    $region51: #{tpu_custom_call.1} parent=1 // pred_check_branch
      %128 = sbr.rel (0) target = $region53
    $region52: #{tpu_custom_call.1} parent=1 // pred_region
      %130 = dma.done [#allocation6], 256
    $region53: #{tpu_custom_call.1} parent=1 // pred_fallthru
      _
    // Predicated region
    $region54: #{tpu_custom_call.1} parent=1 // pred_check
      _
    $region55: #{tpu_custom_call.1} parent=1 // pred_check_branch
      %132 = sbr.rel (0) target = $region57
    $region56: #{tpu_custom_call.1} parent=1 // pred_region
      %134 = dma.done [#allocation6], 256
    $region57: #{tpu_custom_call.1} parent=1 // pred_fallthru
      _
    // Predicated region
    $region58: #{tpu_custom_call.1} parent=1 // pred_check
      _
    $region59: #{tpu_custom_call.1} parent=1 // pred_check_branch
      %136 = sbr.rel (0) target = $region61
    $region60: #{tpu_custom_call.1} parent=1 // pred_region
      %138 = dma.done [#allocation9], 512
    $region61: #{tpu_custom_call.1} parent=1 // pred_fallthru
      _
    // Predicated region
    $region62: #{tpu_custom_call.1} parent=1 // pred_check
      _
    $region63: #{tpu_custom_call.1} parent=1 // pred_check_branch
      %140 = sbr.rel (0) target = $region65
    $region64: #{tpu_custom_call.1} parent=1 // pred_region
      %142 = dma.done [#allocation9], 512
    $region65: #{tpu_custom_call.1} parent=1 // pred_fallthru
      _
    // Predicated region
    $region66: #{tpu_custom_call.1} parent=1 // pred_check
      _
    $region67: #{tpu_custom_call.1} parent=1 // pred_check_branch
      %144 = sbr.rel (0) target = $region69
    $region68: #{tpu_custom_call.1} parent=1 // pred_region
      %146 = dma.done [#allocation12], 512
    $region69: #{tpu_custom_call.1} parent=1 // pred_fallthru
      _
    // Predicated region
    $region70: #{tpu_custom_call.1} parent=1 // pred_check
      _
    $region71: #{tpu_custom_call.1} parent=1 // pred_check_branch
      %148 = sbr.rel (0) target = $region73
    $region72: #{tpu_custom_call.1} parent=1 // pred_region
      %150 = dma.done [#allocation12], 512
    $region73: #{tpu_custom_call.1} parent=1 // pred_fallthru
      _
    %v152 = vld [vmem:[#allocation2] sm:$0xff]
    %v153 = vld [vmem:[#allocation2 + $0x8] sm:$0xff]
    %v154 = vpack.c.bf16 %v153, %v152
    %v155 = vld [vmem:[#allocation5] sm:$0xff]
    %v156 = vld [vmem:[#allocation5 + $0x8] sm:$0xff]
    %v157 = vpack.c.bf16 %v156, %v155
    %v158 = vld [vmem:[#allocation7] sm:$0xff]
    %v159 = vld [vmem:[#allocation7 + $0x8] sm:$0xff]
    %v160 = vpack.c.bf16 %v159, %v158
    %v161 = vld [vmem:[#allocation8] sm:$0xff]
    %v162 = vld [vmem:[#allocation8 + $0x8] sm:$0xff]
    %v163 = vld [vmem:[#allocation8 + $0x10] sm:$0xff]
    %v164 = vld [vmem:[#allocation8 + $0x18] sm:$0xff]
    %v165 = vpack.c.bf16 %v162, %v161
    %v166 = vpack.c.bf16 %v164, %v163
    %v167 = vld [vmem:[#allocation10] sm:$0xff]
    %v168 = vld [vmem:[#allocation10 + $0x8] sm:$0xff]
    %v169 = vld [vmem:[#allocation10 + $0x10] sm:$0xff]
    %v170 = vld [vmem:[#allocation10 + $0x18] sm:$0xff]
    %v171 = vpack.c.bf16 %v168, %v167
    %v172 = vpack.c.bf16 %v170, %v169
    %v173 = vld [vmem:[#allocation11] sm:$0xff]
    %v174 = vld [vmem:[#allocation11 + $0x8] sm:$0xff]
    %v175 = vld [vmem:[#allocation11 + $0x10] sm:$0xff]
    %v176 = vld [vmem:[#allocation11 + $0x18] sm:$0xff]
    %v177 = vpack.c.bf16 %v174, %v173
    %v178 = vpack.c.bf16 %v176, %v175
    %v179 = vld [vmem:[#allocation13] sm:$0xff]
    %v180 = vld [vmem:[#allocation13 + $0x8] sm:$0xff]
    %v181 = vld [vmem:[#allocation13 + $0x10] sm:$0xff]
    %v182 = vld [vmem:[#allocation13 + $0x18] sm:$0xff]
    %v183 = vpack.c.bf16 %v179, %v179
    %v184 = vpack.c.bf16 %v180, %v180
    %v185 = vpack.c.bf16 %v181, %v181
    %v186 = vpack.c.bf16 %v182, %v182
    %v187 = vld [vmem:[%s4] sm:$0x1]
    %v189 = vperm.slane %v187, 0
    %vm191 = vcmask 261120
    %v193 = vsel %vm191, %v154, 0
    %195 = vmatpush.bf16.msra.mxu0 0
    %196 = vmatpush.bf16.msra.mxu0 0
    %197 = vmatpush.bf16.msra.mxu0 0
    %198 = vmatpush.bf16.msra.mxu0 0
    %199 = vmatpush.bf16.msra.mxu0 0
    %200 = vmatpush.bf16.msra.mxu0 0
    %201 = vmatpush.bf16.msra.mxu0 %v166
    %202 = vmatpush.bf16.msra.mxu0 %v165
    %203 = vmatmul.bf16.gmra.mxu0 %v193
    %v204 = vpop.f32.mrf.mxu0
    %v205 = vadd.f32 %v189, %v204
    %v206 = vpop.f32.mrf.mxu0
    %v207 = vadd.f32 %v189, %v206
    %208 = vdwg.mxu0
    %v209 = vld [vmem:[%s6] sm:$0x1]
    %v211 = vperm.slane %v209, 0
    %v214 = vsel %vm191, %v157, 0
    %216 = vmatpush.bf16.msra.mxu0 0
    %217 = vmatpush.bf16.msra.mxu0 0
    %218 = vmatpush.bf16.msra.mxu0 0
    %219 = vmatpush.bf16.msra.mxu0 0
    %220 = vmatpush.bf16.msra.mxu0 0
    %221 = vmatpush.bf16.msra.mxu0 0
    %222 = vmatpush.bf16.msra.mxu0 %v172
    %223 = vmatpush.bf16.msra.mxu0 %v171
    %224 = vmatmul.bf16.gmra.mxu0 %v214
    %v225 = vpop.f32.mrf.mxu0
    %v226 = vadd.f32 %v211, %v225
    %v227 = vpop.f32.mrf.mxu0
    %v228 = vadd.f32 %v211, %v227
    %229 = vdwg.mxu0
    %v230 = vld [vmem:[%s8] sm:$0x1]
    %v232 = vperm.slane %v230, 0
    %v235 = vsel %vm191, %v160, 0
    %237 = vmatpush.bf16.msra.mxu0 0
    %238 = vmatpush.bf16.msra.mxu0 0
    %239 = vmatpush.bf16.msra.mxu0 0
    %240 = vmatpush.bf16.msra.mxu0 0
    %241 = vmatpush.bf16.msra.mxu0 0
    %242 = vmatpush.bf16.msra.mxu0 0
    %243 = vmatpush.bf16.msra.mxu0 %v178
    %244 = vmatpush.bf16.msra.mxu0 %v177
    %245 = vmatmul.bf16.gmra.mxu0 %v235
    %v246 = vpop.f32.mrf.mxu0
    %v247 = vadd.f32 %v232, %v246
    %v248 = vpop.f32.mrf.mxu0
    %v249 = vadd.f32 %v232, %v248
    %250 = vdwg.mxu0
    %253 = vrot.lane.b32.xlu0 %v205, 120
    %v254 = vpop.permute.xlu0 %253
    %255 = vrot.lane.b32.xlu0 %v207, 120
    %v256 = vpop.permute.xlu0 %255
    %259 = vrot.lane.b32.xlu0 %v205, 112
    %v260 = vpop.permute.xlu0 %259
    %261 = vrot.lane.b32.xlu0 %v207, 112
    %v262 = vpop.permute.xlu0 %261
    %265 = vrot.lane.b32.xlu0 %v205, 104
    %v266 = vpop.permute.xlu0 %265
    %267 = vrot.lane.b32.xlu0 %v207, 104
    %v268 = vpop.permute.xlu0 %267
    %273 = vrot.lane.b32.xlu0 %v226, 120
    %v274 = vpop.permute.xlu0 %273
    %275 = vrot.lane.b32.xlu0 %v228, 120
    %v276 = vpop.permute.xlu0 %275
    %279 = vrot.lane.b32.xlu0 %v226, 112
    %v280 = vpop.permute.xlu0 %279
    %281 = vrot.lane.b32.xlu0 %v228, 112
    %v282 = vpop.permute.xlu0 %281
    %285 = vrot.lane.b32.xlu0 %v226, 104
    %v286 = vpop.permute.xlu0 %285
    %287 = vrot.lane.b32.xlu0 %v228, 104
    %v288 = vpop.permute.xlu0 %287
    %293 = vrot.lane.b32.xlu0 %v247, 120
    %v294 = vpop.permute.xlu0 %293
    %295 = vrot.lane.b32.xlu0 %v249, 120
    %v296 = vpop.permute.xlu0 %295
    %299 = vrot.lane.b32.xlu0 %v247, 112
    %v300 = vpop.permute.xlu0 %299
    %301 = vrot.lane.b32.xlu0 %v249, 112
    %v302 = vpop.permute.xlu0 %301
    %305 = vrot.lane.b32.xlu0 %v247, 104
    %v306 = vpop.permute.xlu0 %305
    %307 = vrot.lane.b32.xlu0 %v249, 104
    %v308 = vpop.permute.xlu0 %307
    %v311 = vpack.c.bf16 %v205, %v205
    %v312 = vpack.c.bf16 %v254, %v254
    %v313 = vpack.c.bf16 %v260, %v260
    %v314 = vpack.c.bf16 %v266, %v266
    %v315 = vpack.c.bf16 %v226, %v226
    %v316 = vpack.c.bf16 %v274, %v274
    %v317 = vpack.c.bf16 %v280, %v280
    %v318 = vpack.c.bf16 %v286, %v286
    %v319 = vpack.c.bf16 %v247, %v247
    %v320 = vpack.c.bf16 %v294, %v294
    %v321 = vpack.c.bf16 %v300, %v300
    %v322 = vpack.c.bf16 %v306, %v306
    %vm323 = vcmask 64512
    %v325 = vsel %vm323, %v311, 0
    %v328 = vsel %vm323, %v315, 0
    %330 = vmatpush.bf16.xpose.msra.mxu0 0
    %331 = vmatpush.bf16.xpose.msra.mxu0 0
    %332 = vmatpush.bf16.xpose.msra.mxu0 0
    %333 = vmatpush.bf16.xpose.msra.mxu0 0
    %334 = vmatpush.bf16.xpose.msra.mxu0 0
    %335 = vmatpush.bf16.xpose.msra.mxu0 0
    %336 = vmatpush.bf16.xpose.msra.mxu0 0
    %337 = vmatpush.bf16.xpose.msra.mxu0 %v328
    %338 = vmatmul.bf16.gmra.mxu0 %v325
    %v339 = vpop.f32.mrf.mxu0
    %v340 = vadd.f32 0.0, %v339
    %v341 = vpop.f32.mrf.mxu0
    %342 = vdwg.mxu0
    %v344 = vsel %vm323, %v312, 0
    %v347 = vsel %vm323, %v316, 0
    %349 = vmatpush.bf16.xpose.msra.mxu0 0
    %350 = vmatpush.bf16.xpose.msra.mxu0 0
    %351 = vmatpush.bf16.xpose.msra.mxu0 0
    %352 = vmatpush.bf16.xpose.msra.mxu0 0
    %353 = vmatpush.bf16.xpose.msra.mxu0 0
    %354 = vmatpush.bf16.xpose.msra.mxu0 0
    %355 = vmatpush.bf16.xpose.msra.mxu0 0
    %356 = vmatpush.bf16.xpose.msra.mxu0 %v347
    %357 = vmatmul.bf16.gmra.mxu0 %v344
    %v358 = vpop.f32.mrf.mxu0
    %v359 = vadd.f32 0.0, %v358
    %v360 = vpop.f32.mrf.mxu0
    %361 = vdwg.mxu0
    %v363 = vsel %vm323, %v313, 0
    %v366 = vsel %vm323, %v317, 0
    %368 = vmatpush.bf16.xpose.msra.mxu0 0
    %369 = vmatpush.bf16.xpose.msra.mxu0 0
    %370 = vmatpush.bf16.xpose.msra.mxu0 0
    %371 = vmatpush.bf16.xpose.msra.mxu0 0
    %372 = vmatpush.bf16.xpose.msra.mxu0 0
    %373 = vmatpush.bf16.xpose.msra.mxu0 0
    %374 = vmatpush.bf16.xpose.msra.mxu0 0
    %375 = vmatpush.bf16.xpose.msra.mxu0 %v366
    %376 = vmatmul.bf16.gmra.mxu0 %v363
    %v377 = vpop.f32.mrf.mxu0
    %v378 = vadd.f32 0.0, %v377
    %v379 = vpop.f32.mrf.mxu0
    %380 = vdwg.mxu0
    %v382 = vsel %vm323, %v314, 0
    %v385 = vsel %vm323, %v318, 0
    %387 = vmatpush.bf16.xpose.msra.mxu0 0
    %388 = vmatpush.bf16.xpose.msra.mxu0 0
    %389 = vmatpush.bf16.xpose.msra.mxu0 0
    %390 = vmatpush.bf16.xpose.msra.mxu0 0
    %391 = vmatpush.bf16.xpose.msra.mxu0 0
    %392 = vmatpush.bf16.xpose.msra.mxu0 0
    %393 = vmatpush.bf16.xpose.msra.mxu0 0
    %394 = vmatpush.bf16.xpose.msra.mxu0 %v385
    %395 = vmatmul.bf16.gmra.mxu0 %v382
    %v396 = vpop.f32.mrf.mxu0
    %v397 = vadd.f32 0.0, %v396
    %v398 = vpop.f32.mrf.mxu0
    %399 = vdwg.mxu0
    %v400 = vmul.f32 %v340, 0.35355338
    %v401 = vmul.f32 %v359, 0.35355338
    %v402 = vmul.f32 %v378, 0.35355338
    %v403 = vmul.f32 %v397, 0.35355338
    %v404 = vsel %vm323, %v400, -inf
    %405 = vmax.xlane.f32.xlu0 %v404
    %v406 = vpop.xlane.xlu0 %405
    %v407 = vsel %vm323, %v401, -inf
    %408 = vmax.xlane.f32.xlu0 %v407
    %v409 = vpop.xlane.xlu0 %408
    %v410 = vsel %vm323, %v402, -inf
    %411 = vmax.xlane.f32.xlu0 %v410
    %v412 = vpop.xlane.xlu0 %411
    %v413 = vsel %vm323, %v403, -inf
    %414 = vmax.xlane.f32.xlu0 %v413
    %v415 = vpop.xlane.xlu0 %414
    %v416 = vsub.f32 %v400, %v406
    %v417 = vsub.f32 %v401, %v409
    %v418 = vsub.f32 %v402, %v412
    %v419 = vsub.f32 %v403, %v415
    %v420 = vmul.f32 %v416, 1.442695
    %v421 = vpow.pop %v420
    %v422 = vmul.f32 %v417, 1.442695
    %v423 = vpow.pop %v422
    %v424 = vmul.f32 %v418, 1.442695
    %v425 = vpow.pop %v424
    %v426 = vmul.f32 %v419, 1.442695
    %v427 = vpow.pop %v426
    %v428 = vsel %vm323, %v421, 0.0
    %429 = vadd.xlane.f32.xlu0 %v428
    %v430 = vpop.xlane.xlu0 %429
    %v431 = vsel %vm323, %v423, 0.0
    %432 = vadd.xlane.f32.xlu0 %v431
    %v433 = vpop.xlane.xlu0 %432
    %v434 = vsel %vm323, %v425, 0.0
    %435 = vadd.xlane.f32.xlu0 %v434
    %v436 = vpop.xlane.xlu0 %435
    %v437 = vsel %vm323, %v427, 0.0
    %438 = vadd.xlane.f32.xlu0 %v437
    %v439 = vpop.xlane.xlu0 %438
    %v440 = vrcp.pop %v430
    %v441 = vrcp.pop %v433
    %v442 = vrcp.pop %v436
    %v443 = vrcp.pop %v439
    %v444 = vmul.f32 %v421, %v440
    %v445 = vmul.f32 %v423, %v441
    %v446 = vmul.f32 %v425, %v442
    %v447 = vmul.f32 %v427, %v443
    %v448 = vpack.c.bf16 %v444, %v444
    %v449 = vpack.c.bf16 %v445, %v445
    %v450 = vpack.c.bf16 %v446, %v446
    %v451 = vpack.c.bf16 %v447, %v447
    %v453 = vsel %vm323, %v448, 0
    %vm455 = vcmask 1043456
    %v457 = vsel %vm455, %v319, 0
    %459 = vmatpush.bf16.msra.mxu0 0
    %460 = vmatpush.bf16.msra.mxu0 0
    %461 = vmatpush.bf16.msra.mxu0 0
    %462 = vmatpush.bf16.msra.mxu0 0
    %463 = vmatpush.bf16.msra.mxu0 0
    %464 = vmatpush.bf16.msra.mxu0 0
    %465 = vmatpush.bf16.msra.mxu0 0
    %466 = vmatpush.bf16.msra.mxu0 %v457
    %467 = vmatmul.bf16.gmra.mxu0 %v453
    %v468 = vpop.f32.mrf.mxu0
    %v469 = vadd.f32 0.0, %v468
    %v470 = vpop.f32.mrf.mxu0
    %471 = vdwg.mxu0
    %v473 = vsel %vm323, %v449, 0
    %v476 = vsel %vm455, %v320, 0
    %478 = vmatpush.bf16.msra.mxu0 0
    %479 = vmatpush.bf16.msra.mxu0 0
    %480 = vmatpush.bf16.msra.mxu0 0
    %481 = vmatpush.bf16.msra.mxu0 0
    %482 = vmatpush.bf16.msra.mxu0 0
    %483 = vmatpush.bf16.msra.mxu0 0
    %484 = vmatpush.bf16.msra.mxu0 0
    %485 = vmatpush.bf16.msra.mxu0 %v476
    %486 = vmatmul.bf16.gmra.mxu0 %v473
    %v487 = vpop.f32.mrf.mxu0
    %v488 = vadd.f32 0.0, %v487
    %v489 = vpop.f32.mrf.mxu0
    %490 = vdwg.mxu0
    %v492 = vsel %vm323, %v450, 0
    %v495 = vsel %vm455, %v321, 0
    %497 = vmatpush.bf16.msra.mxu0 0
    %498 = vmatpush.bf16.msra.mxu0 0
    %499 = vmatpush.bf16.msra.mxu0 0
    %500 = vmatpush.bf16.msra.mxu0 0
    %501 = vmatpush.bf16.msra.mxu0 0
    %502 = vmatpush.bf16.msra.mxu0 0
    %503 = vmatpush.bf16.msra.mxu0 0
    %504 = vmatpush.bf16.msra.mxu0 %v495
    %505 = vmatmul.bf16.gmra.mxu0 %v492
    %v506 = vpop.f32.mrf.mxu0
    %v507 = vadd.f32 0.0, %v506
    %v508 = vpop.f32.mrf.mxu0
    %509 = vdwg.mxu0
    %v511 = vsel %vm323, %v451, 0
    %v514 = vsel %vm455, %v322, 0
    %516 = vmatpush.bf16.msra.mxu0 0
    %517 = vmatpush.bf16.msra.mxu0 0
    %518 = vmatpush.bf16.msra.mxu0 0
    %519 = vmatpush.bf16.msra.mxu0 0
    %520 = vmatpush.bf16.msra.mxu0 0
    %521 = vmatpush.bf16.msra.mxu0 0
    %522 = vmatpush.bf16.msra.mxu0 0
    %523 = vmatpush.bf16.msra.mxu0 %v514
    %524 = vmatmul.bf16.gmra.mxu0 %v511
    %v525 = vpop.f32.mrf.mxu0
    %v526 = vadd.f32 0.0, %v525
    %v527 = vpop.f32.mrf.mxu0
    %528 = vdwg.mxu0
    %v529 = vpack.c.bf16 %v469, %v469
    %v530 = vpack.c.bf16 %v488, %v488
    %v531 = vpack.c.bf16 %v507, %v507
    %v532 = vpack.c.bf16 %v526, %v526
    %v534 = vsel %vm323, %v529, 0
    %v537 = vsel %vm455, %v183, 0
    %539 = vmatpush.bf16.msra.mxu0 0
    %540 = vmatpush.bf16.msra.mxu0 0
    %541 = vmatpush.bf16.msra.mxu0 0
    %542 = vmatpush.bf16.msra.mxu0 0
    %543 = vmatpush.bf16.msra.mxu0 0
    %544 = vmatpush.bf16.msra.mxu0 0
    %545 = vmatpush.bf16.msra.mxu0 0
    %546 = vmatpush.bf16.msra.mxu0 %v537
    %547 = vmatmul.bf16.gmra.mxu0 %v534
    %v548 = vpop.f32.mrf.mxu0
    %v549 = vadd.f32 0.0, %v548
    %v550 = vpop.f32.mrf.mxu0
    %551 = vdwg.mxu0
    %v553 = vsel %vm323, %v530, 0
    %v556 = vsel %vm455, %v184, 0
    %558 = vmatpush.bf16.msra.mxu0 0
    %559 = vmatpush.bf16.msra.mxu0 0
    %560 = vmatpush.bf16.msra.mxu0 0
    %561 = vmatpush.bf16.msra.mxu0 0
    %562 = vmatpush.bf16.msra.mxu0 0
    %563 = vmatpush.bf16.msra.mxu0 0
    %564 = vmatpush.bf16.msra.mxu0 0
    %565 = vmatpush.bf16.msra.mxu0 %v556
    %566 = vmatmul.bf16.gmra.mxu0 %v553
    %v567 = vpop.f32.mrf.mxu0
    %v568 = vadd.f32 0.0, %v567
    %v569 = vpop.f32.mrf.mxu0
    %570 = vdwg.mxu0
    %v572 = vsel %vm323, %v531, 0
    %v575 = vsel %vm455, %v185, 0
    %577 = vmatpush.bf16.msra.mxu0 0
    %578 = vmatpush.bf16.msra.mxu0 0
    %579 = vmatpush.bf16.msra.mxu0 0
    %580 = vmatpush.bf16.msra.mxu0 0
    %581 = vmatpush.bf16.msra.mxu0 0
    %582 = vmatpush.bf16.msra.mxu0 0
    %583 = vmatpush.bf16.msra.mxu0 0
    %584 = vmatpush.bf16.msra.mxu0 %v575
    %585 = vmatmul.bf16.gmra.mxu0 %v572
    %v586 = vpop.f32.mrf.mxu0
    %v587 = vadd.f32 0.0, %v586
    %v588 = vpop.f32.mrf.mxu0
    %589 = vdwg.mxu0
    %v591 = vsel %vm323, %v532, 0
    %v594 = vsel %vm455, %v186, 0
    %596 = vmatpush.bf16.msra.mxu0 0
    %597 = vmatpush.bf16.msra.mxu0 0
    %598 = vmatpush.bf16.msra.mxu0 0
    %599 = vmatpush.bf16.msra.mxu0 0
    %600 = vmatpush.bf16.msra.mxu0 0
    %601 = vmatpush.bf16.msra.mxu0 0
    %602 = vmatpush.bf16.msra.mxu0 0
    %603 = vmatpush.bf16.msra.mxu0 %v594
    %604 = vmatmul.bf16.gmra.mxu0 %v591
    %v605 = vpop.f32.mrf.mxu0
    %v606 = vadd.f32 0.0, %v605
    %v607 = vpop.f32.mrf.mxu0
    %608 = vdwg.mxu0
    %v609 = vsel %vm191, %v549, 0.0
    %v610 = vsel %vm191, %v568, 0.0
    %v611 = vadd.f32 %v609, %v610
    %v612 = vsel %vm191, %v587, 0.0
    %v613 = vadd.f32 %v611, %v612
    %v614 = vsel %vm191, %v606, 0.0
    %v615 = vadd.f32 %v613, %v614
    %v616 = vld [vmem:[%s10] sm:$0x1]
    %v618 = vperm.slane %v616, 0
    %v620 = vadd.f32 %v615, %v618
    %v621 = vpack.c.bf16 %v207, %v207
    %v622 = vpack.c.bf16 %v256, %v256
    %v623 = vpack.c.bf16 %v262, %v262
    %v624 = vpack.c.bf16 %v268, %v268
    %v625 = vpack.c.bf16 %v228, %v228
    %v626 = vpack.c.bf16 %v276, %v276
    %v627 = vpack.c.bf16 %v282, %v282
    %v628 = vpack.c.bf16 %v288, %v288
    %v629 = vpack.c.bf16 %v249, %v249
    %v630 = vpack.c.bf16 %v296, %v296
    %v631 = vpack.c.bf16 %v302, %v302
    %v632 = vpack.c.bf16 %v308, %v308
    %v634 = vsel %vm323, %v621, 0
    %v637 = vsel %vm323, %v625, 0
    %639 = vmatpush.bf16.xpose.msra.mxu0 0
    %640 = vmatpush.bf16.xpose.msra.mxu0 0
    %641 = vmatpush.bf16.xpose.msra.mxu0 0
    %642 = vmatpush.bf16.xpose.msra.mxu0 0
    %643 = vmatpush.bf16.xpose.msra.mxu0 0
    %644 = vmatpush.bf16.xpose.msra.mxu0 0
    %645 = vmatpush.bf16.xpose.msra.mxu0 0
    %646 = vmatpush.bf16.xpose.msra.mxu0 %v637
    %647 = vmatmul.bf16.gmra.mxu0 %v634
    %v648 = vpop.f32.mrf.mxu0
    %v649 = vadd.f32 0.0, %v648
    %v650 = vpop.f32.mrf.mxu0
    %651 = vdwg.mxu0
    %v653 = vsel %vm323, %v622, 0
    %v656 = vsel %vm323, %v626, 0
    %658 = vmatpush.bf16.xpose.msra.mxu0 0
    %659 = vmatpush.bf16.xpose.msra.mxu0 0
    %660 = vmatpush.bf16.xpose.msra.mxu0 0
    %661 = vmatpush.bf16.xpose.msra.mxu0 0
    %662 = vmatpush.bf16.xpose.msra.mxu0 0
    %663 = vmatpush.bf16.xpose.msra.mxu0 0
    %664 = vmatpush.bf16.xpose.msra.mxu0 0
    %665 = vmatpush.bf16.xpose.msra.mxu0 %v656
    %666 = vmatmul.bf16.gmra.mxu0 %v653
    %v667 = vpop.f32.mrf.mxu0
    %v668 = vadd.f32 0.0, %v667
    %v669 = vpop.f32.mrf.mxu0
    %670 = vdwg.mxu0
    %v672 = vsel %vm323, %v623, 0
    %v675 = vsel %vm323, %v627, 0
    %677 = vmatpush.bf16.xpose.msra.mxu0 0
    %678 = vmatpush.bf16.xpose.msra.mxu0 0
    %679 = vmatpush.bf16.xpose.msra.mxu0 0
    %680 = vmatpush.bf16.xpose.msra.mxu0 0
    %681 = vmatpush.bf16.xpose.msra.mxu0 0
    %682 = vmatpush.bf16.xpose.msra.mxu0 0
    %683 = vmatpush.bf16.xpose.msra.mxu0 0
    %684 = vmatpush.bf16.xpose.msra.mxu0 %v675
    %685 = vmatmul.bf16.gmra.mxu0 %v672
    %v686 = vpop.f32.mrf.mxu0
    %v687 = vadd.f32 0.0, %v686
    %v688 = vpop.f32.mrf.mxu0
    %689 = vdwg.mxu0
    %v691 = vsel %vm323, %v624, 0
    %v694 = vsel %vm323, %v628, 0
    %696 = vmatpush.bf16.xpose.msra.mxu0 0
    %697 = vmatpush.bf16.xpose.msra.mxu0 0
    %698 = vmatpush.bf16.xpose.msra.mxu0 0
    %699 = vmatpush.bf16.xpose.msra.mxu0 0
    %700 = vmatpush.bf16.xpose.msra.mxu0 0
    %701 = vmatpush.bf16.xpose.msra.mxu0 0
    %702 = vmatpush.bf16.xpose.msra.mxu0 0
    %703 = vmatpush.bf16.xpose.msra.mxu0 %v694
    %704 = vmatmul.bf16.gmra.mxu0 %v691
    %v705 = vpop.f32.mrf.mxu0
    %v706 = vadd.f32 0.0, %v705
    %v707 = vpop.f32.mrf.mxu0
    %708 = vdwg.mxu0
    %v709 = vmul.f32 %v649, 0.35355338
    %v710 = vmul.f32 %v668, 0.35355338
    %v711 = vmul.f32 %v687, 0.35355338
    %v712 = vmul.f32 %v706, 0.35355338
    %v713 = vsel %vm323, %v709, -inf
    %714 = vmax.xlane.f32.xlu0 %v713
    %v715 = vpop.xlane.xlu0 %714
    %v716 = vsel %vm323, %v710, -inf
    %717 = vmax.xlane.f32.xlu0 %v716
    %v718 = vpop.xlane.xlu0 %717
    %v719 = vsel %vm323, %v711, -inf
    %720 = vmax.xlane.f32.xlu0 %v719
    %v721 = vpop.xlane.xlu0 %720
    %v722 = vsel %vm323, %v712, -inf
    %723 = vmax.xlane.f32.xlu0 %v722
    %v724 = vpop.xlane.xlu0 %723
    %v725 = vsub.f32 %v709, %v715
    %v726 = vsub.f32 %v710, %v718
    %v727 = vsub.f32 %v711, %v721
    %v728 = vsub.f32 %v712, %v724
    %v729 = vmul.f32 %v725, 1.442695
    %v730 = vpow.pop %v729
    %v731 = vmul.f32 %v726, 1.442695
    %v732 = vpow.pop %v731
    %v733 = vmul.f32 %v727, 1.442695
    %v734 = vpow.pop %v733
    %v735 = vmul.f32 %v728, 1.442695
    %v736 = vpow.pop %v735
    %v737 = vsel %vm323, %v730, 0.0
    %738 = vadd.xlane.f32.xlu0 %v737
    %v739 = vpop.xlane.xlu0 %738
    %v740 = vsel %vm323, %v732, 0.0
    %741 = vadd.xlane.f32.xlu0 %v740
    %v742 = vpop.xlane.xlu0 %741
    %v743 = vsel %vm323, %v734, 0.0
    %744 = vadd.xlane.f32.xlu0 %v743
    %v745 = vpop.xlane.xlu0 %744
    %v746 = vsel %vm323, %v736, 0.0
    %747 = vadd.xlane.f32.xlu0 %v746
    %v748 = vpop.xlane.xlu0 %747
    %v749 = vrcp.pop %v739
    %v750 = vrcp.pop %v742
    %v751 = vrcp.pop %v745
    %v752 = vrcp.pop %v748
    %v753 = vmul.f32 %v730, %v749
    %v754 = vmul.f32 %v732, %v750
    %v755 = vmul.f32 %v734, %v751
    %v756 = vmul.f32 %v736, %v752
    %v757 = vpack.c.bf16 %v753, %v753
    %v758 = vpack.c.bf16 %v754, %v754
    %v759 = vpack.c.bf16 %v755, %v755
    %v760 = vpack.c.bf16 %v756, %v756
    %v762 = vsel %vm323, %v757, 0
    %v765 = vsel %vm455, %v629, 0
    %767 = vmatpush.bf16.msra.mxu0 0
    %768 = vmatpush.bf16.msra.mxu0 0
    %769 = vmatpush.bf16.msra.mxu0 0
    %770 = vmatpush.bf16.msra.mxu0 0
    %771 = vmatpush.bf16.msra.mxu0 0
    %772 = vmatpush.bf16.msra.mxu0 0
    %773 = vmatpush.bf16.msra.mxu0 0
    %774 = vmatpush.bf16.msra.mxu0 %v765
    %775 = vmatmul.bf16.gmra.mxu0 %v762
    %v776 = vpop.f32.mrf.mxu0
    %v777 = vadd.f32 0.0, %v776
    %v778 = vpop.f32.mrf.mxu0
    %779 = vdwg.mxu0
    %v781 = vsel %vm323, %v758, 0
    %v784 = vsel %vm455, %v630, 0
    %786 = vmatpush.bf16.msra.mxu0 0
    %787 = vmatpush.bf16.msra.mxu0 0
    %788 = vmatpush.bf16.msra.mxu0 0
    %789 = vmatpush.bf16.msra.mxu0 0
    %790 = vmatpush.bf16.msra.mxu0 0
    %791 = vmatpush.bf16.msra.mxu0 0
    %792 = vmatpush.bf16.msra.mxu0 0
    %793 = vmatpush.bf16.msra.mxu0 %v784
    %794 = vmatmul.bf16.gmra.mxu0 %v781
    %v795 = vpop.f32.mrf.mxu0
    %v796 = vadd.f32 0.0, %v795
    %v797 = vpop.f32.mrf.mxu0
    %798 = vdwg.mxu0
    %v800 = vsel %vm323, %v759, 0
    %v803 = vsel %vm455, %v631, 0
    %805 = vmatpush.bf16.msra.mxu0 0
    %806 = vmatpush.bf16.msra.mxu0 0
    %807 = vmatpush.bf16.msra.mxu0 0
    %808 = vmatpush.bf16.msra.mxu0 0
    %809 = vmatpush.bf16.msra.mxu0 0
    %810 = vmatpush.bf16.msra.mxu0 0
    %811 = vmatpush.bf16.msra.mxu0 0
    %812 = vmatpush.bf16.msra.mxu0 %v803
    %813 = vmatmul.bf16.gmra.mxu0 %v800
    %v814 = vpop.f32.mrf.mxu0
    %v815 = vadd.f32 0.0, %v814
    %v816 = vpop.f32.mrf.mxu0
    %817 = vdwg.mxu0
    %v819 = vsel %vm323, %v760, 0
    %v822 = vsel %vm455, %v632, 0
    %824 = vmatpush.bf16.msra.mxu0 0
    %825 = vmatpush.bf16.msra.mxu0 0
    %826 = vmatpush.bf16.msra.mxu0 0
    %827 = vmatpush.bf16.msra.mxu0 0
    %828 = vmatpush.bf16.msra.mxu0 0
    %829 = vmatpush.bf16.msra.mxu0 0
    %830 = vmatpush.bf16.msra.mxu0 0
    %831 = vmatpush.bf16.msra.mxu0 %v822
    %832 = vmatmul.bf16.gmra.mxu0 %v819
    %v833 = vpop.f32.mrf.mxu0
    %v834 = vadd.f32 0.0, %v833
    %v835 = vpop.f32.mrf.mxu0
    %836 = vdwg.mxu0
    %v837 = vpack.c.bf16 %v777, %v777
    %v838 = vpack.c.bf16 %v796, %v796
    %v839 = vpack.c.bf16 %v815, %v815
    %v840 = vpack.c.bf16 %v834, %v834
    %v842 = vsel %vm323, %v837, 0
    %844 = vmatpush.bf16.msra.mxu0 0
    %845 = vmatpush.bf16.msra.mxu0 0
    %846 = vmatpush.bf16.msra.mxu0 0
    %847 = vmatpush.bf16.msra.mxu0 0
    %848 = vmatpush.bf16.msra.mxu0 0
    %849 = vmatpush.bf16.msra.mxu0 0
    %850 = vmatpush.bf16.msra.mxu0 0
    %851 = vmatpush.bf16.msra.mxu0 %v537
    %852 = vmatmul.bf16.gmra.mxu0 %v842
    %v853 = vpop.f32.mrf.mxu0
    %v854 = vadd.f32 0.0, %v853
    %v855 = vpop.f32.mrf.mxu0
    %856 = vdwg.mxu0
    %v858 = vsel %vm323, %v838, 0
    %860 = vmatpush.bf16.msra.mxu0 0
    %861 = vmatpush.bf16.msra.mxu0 0
    %862 = vmatpush.bf16.msra.mxu0 0
    %863 = vmatpush.bf16.msra.mxu0 0
    %864 = vmatpush.bf16.msra.mxu0 0
    %865 = vmatpush.bf16.msra.mxu0 0
    %866 = vmatpush.bf16.msra.mxu0 0
    %867 = vmatpush.bf16.msra.mxu0 %v556
    %868 = vmatmul.bf16.gmra.mxu0 %v858
    %v869 = vpop.f32.mrf.mxu0
    %v870 = vadd.f32 0.0, %v869
    %v871 = vpop.f32.mrf.mxu0
    %872 = vdwg.mxu0
    %v874 = vsel %vm323, %v839, 0
    %876 = vmatpush.bf16.msra.mxu0 0
    %877 = vmatpush.bf16.msra.mxu0 0
    %878 = vmatpush.bf16.msra.mxu0 0
    %879 = vmatpush.bf16.msra.mxu0 0
    %880 = vmatpush.bf16.msra.mxu0 0
    %881 = vmatpush.bf16.msra.mxu0 0
    %882 = vmatpush.bf16.msra.mxu0 0
    %883 = vmatpush.bf16.msra.mxu0 %v575
    %884 = vmatmul.bf16.gmra.mxu0 %v874
    %v885 = vpop.f32.mrf.mxu0
    %v886 = vadd.f32 0.0, %v885
    %v887 = vpop.f32.mrf.mxu0
    %888 = vdwg.mxu0
    %v890 = vsel %vm323, %v840, 0
    %892 = vmatpush.bf16.msra.mxu0 0
    %893 = vmatpush.bf16.msra.mxu0 0
    %894 = vmatpush.bf16.msra.mxu0 0
    %895 = vmatpush.bf16.msra.mxu0 0
    %896 = vmatpush.bf16.msra.mxu0 0
    %897 = vmatpush.bf16.msra.mxu0 0
    %898 = vmatpush.bf16.msra.mxu0 0
    %899 = vmatpush.bf16.msra.mxu0 %v594
    %900 = vmatmul.bf16.gmra.mxu0 %v890
    %v901 = vpop.f32.mrf.mxu0
    %v902 = vadd.f32 0.0, %v901
    %v903 = vpop.f32.mrf.mxu0
    %904 = vdwg.mxu0
    %v905 = vsel %vm191, %v854, 0.0
    %v906 = vsel %vm191, %v870, 0.0
    %v907 = vadd.f32 %v905, %v906
    %v908 = vsel %vm191, %v886, 0.0
    %v909 = vadd.f32 %v907, %v908
    %v910 = vsel %vm191, %v902, 0.0
    %v911 = vadd.f32 %v909, %v910
    %v912 = vld [vmem:[%s10] sm:$0x1]
    %v914 = vperm.slane %v912, 0
    %v916 = vadd.f32 %v911, %v914
    %917 = vst.msk [vmem:[#allocation14] sm:$0xff] %vm191, %v620
    %918 = vst.msk [vmem:[#allocation14 + $0x8] sm:$0xff] %vm191, %v916
    %919 = vst.msk [vmem:[#allocation15] sm:$0xff] %vm323, %v444
    %920 = vst.msk [vmem:[#allocation15 + $0x8] sm:$0xff] %vm323, %v445
    %921 = vst.msk [vmem:[#allocation15 + $0x10] sm:$0xff] %vm323, %v446
    %922 = vst.msk [vmem:[#allocation15 + $0x18] sm:$0xff] %vm323, %v447
    %923 = vst.msk [vmem:[#allocation15 + $0x20] sm:$0xff] %vm323, %v753
    %924 = vst.msk [vmem:[#allocation15 + $0x28] sm:$0xff] %vm323, %v754
    %925 = vst.msk [vmem:[#allocation15 + $0x30] sm:$0xff] %vm323, %v755
    %926 = vst.msk [vmem:[#allocation15 + $0x38] sm:$0xff] %vm323, %v756
    // Predicated region
    $region74: #{tpu_custom_call.1} parent=1 // pred_check
      _
    $region75: #{tpu_custom_call.1} parent=1 // pred_check_branch
      %928 = sbr.rel (0) target = $region77
    $region76: #{tpu_custom_call.1} parent=1 // pred_region
      %930 = vsyncadd [#allocation4], 0
      %s931 = sshll.u32 [#allocation14], 4
      %s932 = int_to_ptr.vmem [resolvable:$true] %s931
      %s933 = sshll.u32 %s11, 4
      %s934 = int_to_ptr.hbm [resolvable:$true] %s933
      %939 = dma.vmem_to_hbm [thread:$0]  %s932, 256, %s934, [#allocation4], 128, 128, 8
    $region77: #{tpu_custom_call.1} parent=1 // pred_fallthru
      _
    // Predicated region
    $region78: #{tpu_custom_call.1} parent=1 // pred_check
      _
    $region79: #{tpu_custom_call.1} parent=1 // pred_check_branch
      %941 = sbr.rel (0) target = $region81
    $region80: #{tpu_custom_call.1} parent=1 // pred_region
      %943 = vsyncadd [#allocation16], 0
      %s944 = sshll.u32 [#allocation15], 4
      %s945 = int_to_ptr.vmem [resolvable:$true] %s944
      %s946 = sshll.u32 %s12, 4
      %s947 = int_to_ptr.hbm [resolvable:$true] %s946
      %952 = dma.vmem_to_hbm [thread:$0]  %s945, 1024, %s947, [#allocation16], 128, 128, 8
    $region81: #{tpu_custom_call.1} parent=1 // pred_fallthru
      _
    // Predicated region
    $region82: #{tpu_custom_call.1} parent=1 // pred_check
      _
    $region83: #{tpu_custom_call.1} parent=1 // pred_check_branch
      %954 = sbr.rel (0) target = $region85
    $region84: #{tpu_custom_call.1} parent=1 // pred_region
      %956 = dma.done [#allocation4], 256
    $region85: #{tpu_custom_call.1} parent=1 // pred_fallthru
      _
    // Predicated region
    $region86: #{tpu_custom_call.1} parent=1 // pred_check
      _
    $region87: #{tpu_custom_call.1} parent=1 // pred_check_branch
      %958 = sbr.rel (0) target = $region89
    $region88: #{tpu_custom_call.1} parent=1 // pred_region
      %960 = dma.done [#allocation16], 1024
    $region89: #{tpu_custom_call.1} parent=1 // pred_fallthru
      _
    %961 = vsyncpa [#allocation3], 1
    %962 = vsyncpa [#allocation6], 1
    %963 = vsyncpa [#allocation9], 1
    %964 = vsyncpa [#allocation12], 1
    %965 = vsyncpa [#allocation4], 1
    %966 = vsyncpa [#allocation16], 1

</llo_original>
